<compile_context>
chip_gen: v7x
topology: tpu7x:2x2x1
jax: 0.10.0
libtpu: 0.0.40
codegen_flags: <defaults>
</compile_context>

<pallas_src>
import functools

import jax
import jax.numpy as jnp
from jax import lax
from jax.experimental import pallas as pl
from jax.experimental.pallas import tpu as pltpu

EPS = 1e-5
LANE = 128
HIDDEN = (128, 64, 32)


def _bn_relu(h, gamma, beta):
    """Training-mode BatchNorm1d (biased variance) + ReLU, folded to one FMA.

    h: (N, 128) f32; gamma/beta: (1, 128) f32 (zero in padded lanes).
    """
    mu = jnp.mean(h, axis=0, keepdims=True)
    msq = jnp.mean(h * h, axis=0, keepdims=True)
    var = jnp.maximum(msq - mu * mu, 0.0)          # biased var, one pass
    scale = gamma * lax.rsqrt(var + EPS)           # rsqrt -> EUP slot
    shift = beta - mu * scale
    return jnp.maximum(h * scale + shift, 0.0)     # single mul+add per element


def deep_model_kernel(x_ref, w_ref, p_ref, o_ref, *, row_bounds):
    """Fused 4x(Linear) + 3x(BN+ReLU) forward. All operands f32.

    x_ref: (N, in)        w_ref: (in + 3*128, 128)     p_ref: (8, 128)
    row_bounds: 4 static (start, stop) sublane ranges of w1..w4 in w_slab.
    """
    (a0, a1), (b0, b1), (c0, c1), (d0, d1) = row_bounds
    x = x_ref[...]
    p = p_ref[...]

    h = jnp.dot(x, w_ref[a0:a1, :], preferred_element_type=jnp.float32)
    h = _bn_relu(h, p[0:1, :], p[1:2, :])

    h = jnp.dot(h, w_ref[b0:b1, :], preferred_element_type=jnp.float32)
    h = _bn_relu(h, p[2:3, :], p[3:4, :])

    h = jnp.dot(h, w_ref[c0:c1, :], preferred_element_type=jnp.float32)
    h = _bn_relu(h, p[4:5, :], p[5:6, :])

    out = jnp.dot(h, w_ref[d0:d1, :], preferred_element_type=jnp.float32)
    o_ref[...] = (out + p[6:7, :]).astype(o_ref.dtype)


def _full_spec(shape):
    """Whole-array VMEM block for a gridless call."""
    zeros = (0,) * len(shape)
    return pl.BlockSpec(shape, lambda z=zeros: z)


def pack_params(params, input_size, output_size):
    """One-time packing of all parameters into two lane-dense f32 slabs."""
    assert input_size % 8 == 0, "input_size must be a multiple of 8 (sublane)"
    assert output_size <= LANE

    h1, h2, h3 = HIDDEN
    # Weights are stored (in_features, out_features): kernel computes x @ W.
    w1 = params["w1"]                                                     # (in, 128)
    w2 = jnp.pad(params["w2"], ((0, 0), (0, LANE - h2)))                  # (128, 128)
    w3 = jnp.pad(params["w3"], ((0, LANE - h2), (0, LANE - h3)))          # (128, 128)
    w4 = jnp.pad(params["w4"], ((0, LANE - h3), (0, LANE - output_size))) # (128, 128)
    w_slab = jnp.concatenate([w1, w2, w3, w4], axis=0).astype(jnp.float32)

    def pad_lane(v, n):
        return jnp.pad(jnp.reshape(v, (1, -1)), ((0, 0), (0, LANE - n)))

    # b1/b2/b3 intentionally NOT packed: exact no-op under batch-stats BN.
    p_rows = [
        pad_lane(params["g1"], h1), pad_lane(params["be1"], h1),
        pad_lane(params["g2"], h2), pad_lane(params["be2"], h2),
        pad_lane(params["g3"], h3), pad_lane(params["be3"], h3),
        pad_lane(params["b4"], output_size),
        jnp.zeros((1, LANE), jnp.float32),
    ]
    p_slab = jnp.concatenate(p_rows, axis=0).astype(jnp.float32)  # (8, 128)

    row_bounds, off = [], 0
    for rows in (input_size, LANE, LANE, LANE):
        row_bounds.append((off, off + rows))
        off += rows
    return w_slab, p_slab, tuple(row_bounds)


def make_forward(output_size, row_bounds):
    """Build a jitted forward(x, w_slab, p_slab) -> (N, output_size)."""
    kernel = functools.partial(deep_model_kernel, row_bounds=row_bounds)

    @jax.jit
    def forward(x, w_slab, p_slab):
        n = x.shape[0]
        out_padded = pl.pallas_call(
            kernel,
            out_shape=jax.ShapeDtypeStruct((n, LANE), jnp.float32),
            in_specs=[_full_spec(x.shape),
                      _full_spec(w_slab.shape),
                      _full_spec(p_slab.shape)],
            out_specs=_full_spec((n, LANE)),
            compiler_params=pltpu.CompilerParams(
                vmem_limit_bytes=32 * 1024 * 1024,
            ),
        )(x, w_slab, p_slab)
        return out_padded[:, :output_size]

    return forward


def init_params(key, input_size, output_size):
    """Deterministic synthetic parameters (shapes match the PyTorch module)."""
    dims = [input_size, *HIDDEN, output_size]
    params = {}
    keys = jax.random.split(key, 8)
    for i in range(4):
        fan_in, fan_out = dims[i], dims[i + 1]
        w = jax.random.normal(keys[2 * i], (fan_in, fan_out), jnp.float32) * (1.0 / jnp.sqrt(fan_in))
        b = jax.random.normal(keys[2 * i + 1], (1, fan_out), jnp.float32) * 0.01
        params[f"w{i+1}"] = w
        params[f"b{i+1}"] = b              # b1-b3 kept for fidelity; cancelled by training BN
        if i < 3:                          # BatchNorm1d affine params
            params[f"g{i+1}"] = jnp.ones((1, fan_out), jnp.float32)
            params[f"be{i+1}"] = jnp.zeros((1, fan_out), jnp.float32)
    return params


def reference_forward(x, params):
    """Pure-JAX reference of the PyTorch module (training-mode BN, with biases)."""
    h = x
    for i in range(3):
        h = h @ params[f"w{i+1}"] + params[f"b{i+1}"]
        mu = jnp.mean(h, axis=0, keepdims=True)
        var = jnp.var(h, axis=0, keepdims=True)        # biased, matches BN training
        h = (h - mu) * lax.rsqrt(var + EPS)
        h = h * params[f"g{i+1}"] + params[f"be{i+1}"]
        h = jnp.maximum(h, 0.0)
    return h @ params["w4"] + params["b4"]


if __name__ == "__main__":
    key = jax.random.PRNGKey(0)
    k_x, k_p = jax.random.split(key)

    N, INPUT_SIZE, OUTPUT_SIZE = 8, 32, 16
    x = jax.random.normal(k_x, (N, INPUT_SIZE), jnp.float32)
    params = init_params(k_p, INPUT_SIZE, OUTPUT_SIZE)

    # One-time packing + jitted forward (no per-call param prep).
    w_slab, p_slab, row_bounds = pack_params(params, INPUT_SIZE, OUTPUT_SIZE)
    forward = make_forward(OUTPUT_SIZE, row_bounds)

    out = forward(x, w_slab, p_slab)
    jax.block_until_ready(out)

    assert out.shape == (N, OUTPUT_SIZE)
    assert bool(jnp.all(jnp.isfinite(out)))

    ref = reference_forward(x, params)
    assert bool(jnp.allclose(out, ref, rtol=1e-3, atol=1e-3)), "mismatch vs reference"

    print("KERNEL_OK")
</pallas_src>

<mosaic_0001>
module attributes {stable_mosaic.version = 11 : i64} {
  func.func @deep_model_kernel(%arg0: memref<8x32xf32, #tpu.memory_space<vmem>>, %arg1: memref<416x128xf32, #tpu.memory_space<vmem>>, %arg2: memref<8x128xf32, #tpu.memory_space<vmem>>, %arg3: memref<8x128xf32, #tpu.memory_space<vmem>>) attributes {dimension_semantics = [], scalar_prefetch = 0 : i64, scratch_operands = 0 : i64, tpu.core_type = #tpu.core_type<tc>} {
    %c0 = arith.constant 0 : index
    %c0_0 = arith.constant 0 : index
    %0 = vector.load %arg0[%c0, %c0_0] : memref<8x32xf32, #tpu.memory_space<vmem>>, vector<8x32xf32>
    %c0_1 = arith.constant 0 : index
    %c0_2 = arith.constant 0 : index
    %1 = vector.load %arg2[%c0_1, %c0_2] : memref<8x128xf32, #tpu.memory_space<vmem>>, vector<8x128xf32>
    %c0_3 = arith.constant 0 : index
    %c0_4 = arith.constant 0 : index
    %2 = vector.load %arg1[%c0_3, %c0_4] : memref<416x128xf32, #tpu.memory_space<vmem>>, vector<32x128xf32>
    %cst = arith.constant dense<0.000000e+00> : vector<8x128xf32>
    %3 = tpu.matmul %0, %2, %cst {dimension_numbers = #tpu.dot_dimension_numbers<[1], [0], [0], [1], [0, 0, 1, 1], [], []>} : vector<8x32xf32>, vector<32x128xf32>, vector<8x128xf32> -> vector<8x128xf32>
    %4 = vector.extract_strided_slice %1 {offsets = [0, 0], sizes = [1, 128], strides = [1, 1]} : vector<8x128xf32> to vector<1x128xf32>
    %5 = vector.extract_strided_slice %1 {offsets = [1, 0], sizes = [1, 128], strides = [1, 1]} : vector<8x128xf32> to vector<1x128xf32>
    %cst_5 = arith.constant dense<0.000000e+00> : vector<128xf32>
    %6 = vector.multi_reduction <add>, %3, %cst_5 [0] : vector<8x128xf32> to vector<128xf32>
    %7 = vector.shape_cast %6 : vector<128xf32> to vector<1x128xf32>
    %cst_6 = arith.constant 8.000000e+00 : f32
    %8 = vector.broadcast %cst_6 : f32 to vector<1x128xf32>
    %9 = arith.divf %7, %8 : vector<1x128xf32>
    %10 = arith.mulf %3, %3 : vector<8x128xf32>
    %cst_7 = arith.constant dense<0.000000e+00> : vector<128xf32>
    %11 = vector.multi_reduction <add>, %10, %cst_7 [0] : vector<8x128xf32> to vector<128xf32>
    %12 = vector.shape_cast %11 : vector<128xf32> to vector<1x128xf32>
    %cst_8 = arith.constant 8.000000e+00 : f32
    %13 = vector.broadcast %cst_8 : f32 to vector<1x128xf32>
    %14 = arith.divf %12, %13 : vector<1x128xf32>
    %15 = arith.mulf %9, %9 : vector<1x128xf32>
    %16 = arith.subf %14, %15 : vector<1x128xf32>
    %cst_9 = arith.constant 0.000000e+00 : f32
    %17 = vector.broadcast %cst_9 : f32 to vector<1x128xf32>
    %18 = arith.maximumf %16, %17 : vector<1x128xf32>
    %cst_10 = arith.constant 9.99999974E-6 : f32
    %19 = vector.broadcast %cst_10 : f32 to vector<1x128xf32>
    %20 = arith.addf %18, %19 : vector<1x128xf32>
    %21 = math.rsqrt %20 : vector<1x128xf32>
    %22 = arith.mulf %4, %21 : vector<1x128xf32>
    %23 = arith.mulf %9, %22 : vector<1x128xf32>
    %24 = arith.subf %5, %23 : vector<1x128xf32>
    %25 = vector.broadcast %22 : vector<1x128xf32> to vector<8x128xf32>
    %26 = arith.mulf %3, %25 : vector<8x128xf32>
    %27 = vector.broadcast %24 : vector<1x128xf32> to vector<8x128xf32>
    %28 = arith.addf %26, %27 : vector<8x128xf32>
    %cst_11 = arith.constant 0.000000e+00 : f32
    %29 = vector.broadcast %cst_11 : f32 to vector<8x128xf32>
    %30 = arith.maximumf %28, %29 : vector<8x128xf32>
    %c32 = arith.constant 32 : index
    %c0_12 = arith.constant 0 : index
    %31 = vector.load %arg1[%c32, %c0_12] : memref<416x128xf32, #tpu.memory_space<vmem>>, vector<128x128xf32>
    %cst_13 = arith.constant dense<0.000000e+00> : vector<8x128xf32>
    %32 = tpu.matmul %30, %31, %cst_13 {dimension_numbers = #tpu.dot_dimension_numbers<[1], [0], [0], [1], [0, 0, 1, 1], [], []>} : vector<8x128xf32>, vector<128x128xf32>, vector<8x128xf32> -> vector<8x128xf32>
    %33 = vector.extract_strided_slice %1 {offsets = [2, 0], sizes = [1, 128], strides = [1, 1]} : vector<8x128xf32> to vector<1x128xf32>
    %34 = vector.extract_strided_slice %1 {offsets = [3, 0], sizes = [1, 128], strides = [1, 1]} : vector<8x128xf32> to vector<1x128xf32>
    %cst_14 = arith.constant dense<0.000000e+00> : vector<128xf32>
    %35 = vector.multi_reduction <add>, %32, %cst_14 [0] : vector<8x128xf32> to vector<128xf32>
    %36 = vector.shape_cast %35 : vector<128xf32> to vector<1x128xf32>
    %cst_15 = arith.constant 8.000000e+00 : f32
    %37 = vector.broadcast %cst_15 : f32 to vector<1x128xf32>
    %38 = arith.divf %36, %37 : vector<1x128xf32>
    %39 = arith.mulf %32, %32 : vector<8x128xf32>
    %cst_16 = arith.constant dense<0.000000e+00> : vector<128xf32>
    %40 = vector.multi_reduction <add>, %39, %cst_16 [0] : vector<8x128xf32> to vector<128xf32>
    %41 = vector.shape_cast %40 : vector<128xf32> to vector<1x128xf32>
    %cst_17 = arith.constant 8.000000e+00 : f32
    %42 = vector.broadcast %cst_17 : f32 to vector<1x128xf32>
    %43 = arith.divf %41, %42 : vector<1x128xf32>
    %44 = arith.mulf %38, %38 : vector<1x128xf32>
    %45 = arith.subf %43, %44 : vector<1x128xf32>
    %cst_18 = arith.constant 0.000000e+00 : f32
    %46 = vector.broadcast %cst_18 : f32 to vector<1x128xf32>
    %47 = arith.maximumf %45, %46 : vector<1x128xf32>
    %cst_19 = arith.constant 9.99999974E-6 : f32
    %48 = vector.broadcast %cst_19 : f32 to vector<1x128xf32>
    %49 = arith.addf %47, %48 : vector<1x128xf32>
    %50 = math.rsqrt %49 : vector<1x128xf32>
    %51 = arith.mulf %33, %50 : vector<1x128xf32>
    %52 = arith.mulf %38, %51 : vector<1x128xf32>
    %53 = arith.subf %34, %52 : vector<1x128xf32>
    %54 = vector.broadcast %51 : vector<1x128xf32> to vector<8x128xf32>
    %55 = arith.mulf %32, %54 : vector<8x128xf32>
    %56 = vector.broadcast %53 : vector<1x128xf32> to vector<8x128xf32>
    %57 = arith.addf %55, %56 : vector<8x128xf32>
    %cst_20 = arith.constant 0.000000e+00 : f32
    %58 = vector.broadcast %cst_20 : f32 to vector<8x128xf32>
    %59 = arith.maximumf %57, %58 : vector<8x128xf32>
    %c160 = arith.constant 160 : index
    %c0_21 = arith.constant 0 : index
    %60 = vector.load %arg1[%c160, %c0_21] : memref<416x128xf32, #tpu.memory_space<vmem>>, vector<128x128xf32>
    %cst_22 = arith.constant dense<0.000000e+00> : vector<8x128xf32>
    %61 = tpu.matmul %59, %60, %cst_22 {dimension_numbers = #tpu.dot_dimension_numbers<[1], [0], [0], [1], [0, 0, 1, 1], [], []>} : vector<8x128xf32>, vector<128x128xf32>, vector<8x128xf32> -> vector<8x128xf32>
    %62 = vector.extract_strided_slice %1 {offsets = [4, 0], sizes = [1, 128], strides = [1, 1]} : vector<8x128xf32> to vector<1x128xf32>
    %63 = vector.extract_strided_slice %1 {offsets = [5, 0], sizes = [1, 128], strides = [1, 1]} : vector<8x128xf32> to vector<1x128xf32>
    %cst_23 = arith.constant dense<0.000000e+00> : vector<128xf32>
    %64 = vector.multi_reduction <add>, %61, %cst_23 [0] : vector<8x128xf32> to vector<128xf32>
    %65 = vector.shape_cast %64 : vector<128xf32> to vector<1x128xf32>
    %cst_24 = arith.constant 8.000000e+00 : f32
    %66 = vector.broadcast %cst_24 : f32 to vector<1x128xf32>
    %67 = arith.divf %65, %66 : vector<1x128xf32>
    %68 = arith.mulf %61, %61 : vector<8x128xf32>
    %cst_25 = arith.constant dense<0.000000e+00> : vector<128xf32>
    %69 = vector.multi_reduction <add>, %68, %cst_25 [0] : vector<8x128xf32> to vector<128xf32>
    %70 = vector.shape_cast %69 : vector<128xf32> to vector<1x128xf32>
    %cst_26 = arith.constant 8.000000e+00 : f32
    %71 = vector.broadcast %cst_26 : f32 to vector<1x128xf32>
    %72 = arith.divf %70, %71 : vector<1x128xf32>
    %73 = arith.mulf %67, %67 : vector<1x128xf32>
    %74 = arith.subf %72, %73 : vector<1x128xf32>
    %cst_27 = arith.constant 0.000000e+00 : f32
    %75 = vector.broadcast %cst_27 : f32 to vector<1x128xf32>
    %76 = arith.maximumf %74, %75 : vector<1x128xf32>
    %cst_28 = arith.constant 9.99999974E-6 : f32
    %77 = vector.broadcast %cst_28 : f32 to vector<1x128xf32>
    %78 = arith.addf %76, %77 : vector<1x128xf32>
    %79 = math.rsqrt %78 : vector<1x128xf32>
    %80 = arith.mulf %62, %79 : vector<1x128xf32>
    %81 = arith.mulf %67, %80 : vector<1x128xf32>
    %82 = arith.subf %63, %81 : vector<1x128xf32>
    %83 = vector.broadcast %80 : vector<1x128xf32> to vector<8x128xf32>
    %84 = arith.mulf %61, %83 : vector<8x128xf32>
    %85 = vector.broadcast %82 : vector<1x128xf32> to vector<8x128xf32>
    %86 = arith.addf %84, %85 : vector<8x128xf32>
    %cst_29 = arith.constant 0.000000e+00 : f32
    %87 = vector.broadcast %cst_29 : f32 to vector<8x128xf32>
    %88 = arith.maximumf %86, %87 : vector<8x128xf32>
    %c288 = arith.constant 288 : index
    %c0_30 = arith.constant 0 : index
    %89 = vector.load %arg1[%c288, %c0_30] : memref<416x128xf32, #tpu.memory_space<vmem>>, vector<128x128xf32>
    %cst_31 = arith.constant dense<0.000000e+00> : vector<8x128xf32>
    %90 = tpu.matmul %88, %89, %cst_31 {dimension_numbers = #tpu.dot_dimension_numbers<[1], [0], [0], [1], [0, 0, 1, 1], [], []>} : vector<8x128xf32>, vector<128x128xf32>, vector<8x128xf32> -> vector<8x128xf32>
    %91 = vector.extract_strided_slice %1 {offsets = [6, 0], sizes = [1, 128], strides = [1, 1]} : vector<8x128xf32> to vector<1x128xf32>
    %92 = vector.broadcast %91 : vector<1x128xf32> to vector<8x128xf32>
    %93 = arith.addf %90, %92 : vector<8x128xf32>
    %c0_32 = arith.constant 0 : index
    %c0_33 = arith.constant 0 : index
    %94 = vector.load %arg3[%c0_32, %c0_33] : memref<8x128xf32, #tpu.memory_space<vmem>>, vector<8x128xf32>
    tpu.vector_store %arg3[%c0_32, %c0_33], %93 {strides = array<i32>} : memref<8x128xf32, #tpu.memory_space<vmem>>, vector<8x128xf32>,
    return
  }
}

</mosaic_0001>

<llo_original>
// kernel: forward.1
$region0: #{forward.1}
  #allocation0 [shape = 'u32[]', space=smem, size = 0x4, offset = 0x4, fixed_abs, tag = 'smem constant byte address 0x4 - core index']
  #allocation1 [shape = 'u32[144,128]{1,0:T(1,128)}', space=vmem, size = 0x12000, scoped, tag = 'internal scratch']
  %s0 = inlined_call_operand.hbm [shape: f32[8,32], index: 0, kind: input, shape index: {}]
  %s1 = inlined_call_operand.hbm [shape: f32[416,128], index: 1, kind: input, shape index: {}]
  %s2 = inlined_call_operand.hbm [shape: f32[8,128], index: 2, kind: input, shape index: {}]
  %s3 = inlined_call_operand.hbm [shape: f32[8,128], index: 3, kind: output, shape index: {}]
  %s4 = sld [smem:[#allocation0]]
  $region34: #{forward.1} parent=0
    _
  %s6 = ssub.s32 1, %s4
  %s7 = scalar_select 0, %s6, %s4
  $region1: #{forward.1} parent=0
    #allocation2 [shape = 'u8[4096]{0}', space=vmem, size = 0x1000, scoped, tag = 'input window, operand 0, single buffered']
    #allocation3 [shape = 's32[1]{0}', space=sflag, size = 0x4, scoped, tag = 'scoped memory for forward.1']
    #allocation4 [shape = 's32[1]{0}', space=sflag, size = 0x4, scoped, tag = 'scoped memory for forward.1']
    #allocation5 [shape = 'u8[212992]{0}', space=vmem, size = 0x34000, scoped, tag = 'input window, operand 1, single buffered']
    #allocation6 [shape = 's32[1]{0}', space=sflag, size = 0x4, scoped, tag = 'scoped memory for forward.1']
    #allocation7 [shape = 'u8[4096]{0}', space=vmem, size = 0x1000, scoped, tag = 'input window, operand 2, single buffered']
    #allocation8 [shape = 'u8[4096]{0}', space=vmem, size = 0x1000, scoped, tag = 'output window, operand 0, single buffered']
    %8 = vsyncpa [#allocation3], 0
    %9 = vsyncpa [#allocation6], 0
    %10 = vsyncpa [#allocation4], 0
    // Predicated region
    $region2: #{forward.1} parent=1 // pred_check
      _
    $region3: #{forward.1} parent=1 // pred_check_branch
      %12 = sbr.rel (0) target = $region5
    $region4: #{forward.1} parent=1 // pred_region
      %s14 = ssub.s32 128, 128
      %15 = vsyncadd [#allocation3], %s14
      %s17 = sshll.u32 [#allocation2], 4
      %s18 = int_to_ptr.vmem [resolvable:$true] %s17
      %20 = dma.hbm_to_vmem [thread:$0]  %s0, 128, %s18, [#allocation3]
    $region5: #{forward.1} parent=1 // pred_fallthru
      _
    // Predicated region
    $region6: #{forward.1} parent=1 // pred_check
      _
    $region7: #{forward.1} parent=1 // pred_check_branch
      %22 = sbr.rel (0) target = $region9
    $region8: #{forward.1} parent=1 // pred_region
      %s24 = ssub.s32 6656, 6656
      %25 = vsyncadd [#allocation6], %s24
      %s26 = sshll.u32 [#allocation5], 4
      %s27 = int_to_ptr.vmem [resolvable:$true] %s26
      %32 = dma.hbm_to_vmem [thread:$0]  %s1, 6656, %s27, [#allocation6], 128, 128, 8
    $region9: #{forward.1} parent=1 // pred_fallthru
      _
    // Predicated region
    $region10: #{forward.1} parent=1 // pred_check
      _
    $region11: #{forward.1} parent=1 // pred_check_branch
      %34 = sbr.rel (0) target = $region13
    $region12: #{forward.1} parent=1 // pred_region
      %s36 = ssub.s32 128, 128
      %37 = vsyncadd [#allocation6], %s36
      %s39 = sshll.u32 [#allocation7], 4
      %s40 = int_to_ptr.vmem [resolvable:$true] %s39
      %42 = dma.hbm_to_vmem [thread:$0]  %s2, 128, %s40, [#allocation6]
    $region13: #{forward.1} parent=1 // pred_fallthru
      _
    // Predicated region
    $region14: #{forward.1} parent=1 // pred_check
      _
    $region15: #{forward.1} parent=1 // pred_check_branch
      %44 = sbr.rel (0) target = $region17
    $region16: #{forward.1} parent=1 // pred_region
      %45 = dma.done [#allocation3], 128
    $region17: #{forward.1} parent=1 // pred_fallthru
      _
    // Predicated region
    $region18: #{forward.1} parent=1 // pred_check
      _
    $region19: #{forward.1} parent=1 // pred_check_branch
      %47 = sbr.rel (0) target = $region21
    $region20: #{forward.1} parent=1 // pred_region
      %48 = dma.done [#allocation6], 6656
    $region21: #{forward.1} parent=1 // pred_fallthru
      _
    // Predicated region
    $region22: #{forward.1} parent=1 // pred_check
      _
    $region23: #{forward.1} parent=1 // pred_check_branch
      %50 = sbr.rel (0) target = $region25
    $region24: #{forward.1} parent=1 // pred_region
      %51 = dma.done [#allocation6], 128
    $region25: #{forward.1} parent=1 // pred_fallthru
      _
    %v52 = vld [vmem:[#allocation2] sm:$0xff]
    %v53 = vld [vmem:[#allocation7] sm:$0xff]
    %v54 = vld [vmem:[#allocation5] sm:$0xff]
    %v55 = vld [vmem:[#allocation5 + $0x8] sm:$0xff]
    %v56 = vld [vmem:[#allocation5 + $0x10] sm:$0xff]
    %v57 = vld [vmem:[#allocation5 + $0x18] sm:$0xff]
    %vm58 = vcmask 261120
    %v60 = vsel %vm58, %v52, 0
    %62 = vmatprep.subr.mxu0 0.0
    %63 = vmatpush1.msra.mxu0 %v54
    %64 = vmatprep.subr.mxu0 0.0
    %65 = vmatpush1.msra.mxu0 %v55
    %66 = vmatprep.subr.mxu0 0.0
    %67 = vmatpush1.msra.mxu0 %v56
    %68 = vmatprep.subr.mxu0 0.0
    %69 = vmatpush1.msra.mxu0 %v57
    %70 = vmatprep.subr.mxu0 0.0
    %71 = vmatpush1.msra.mxu0 0.0
    %72 = vmatprep.subr.mxu0 0.0
    %73 = vmatpush1.msra.mxu0 0.0
    %74 = vmatprep.subr.mxu0 0.0
    %75 = vmatpush1.msra.mxu0 0.0
    %76 = vmatprep.subr.mxu0 0.0
    %77 = vmatpush1.msra.mxu0 0.0
    %78 = vmatprep.subr.mxu0 0.0
    %79 = vmatpush1.msra.mxu0 0.0
    %80 = vmatprep.subr.mxu0 0.0
    %81 = vmatpush1.msra.mxu0 0.0
    %82 = vmatprep.subr.mxu0 0.0
    %83 = vmatpush1.msra.mxu0 0.0
    %84 = vmatprep.subr.mxu0 0.0
    %85 = vmatpush1.msra.mxu0 0.0
    %86 = vmatprep.subr.mxu0 0.0
    %87 = vmatpush1.msra.mxu0 0.0
    %88 = vmatprep.subr.mxu0 0.0
    %89 = vmatpush1.msra.mxu0 0.0
    %90 = vmatprep.subr.mxu0 0.0
    %91 = vmatpush1.msra.mxu0 0.0
    %92 = vmatprep.subr.mxu0 0.0
    %93 = vmatpush1.msra.mxu0 0.0
    %94 = vmatprep.subr.mxu0 0.0
    %95 = vmatpush1.msra.mxu0 0.0
    %96 = vmatprep.subr.mxu0 0.0
    %97 = vmatpush1.msra.mxu0 0.0
    %98 = vmatprep.subr.mxu0 0.0
    %99 = vmatpush1.msra.mxu0 0.0
    %100 = vmatprep.subr.mxu0 0.0
    %101 = vmatpush1.msra.mxu0 0.0
    %102 = vmatprep.subr.mxu0 0.0
    %103 = vmatpush1.msra.mxu0 0.0
    %104 = vmatprep.subr.mxu0 0.0
    %105 = vmatpush1.msra.mxu0 0.0
    %106 = vmatprep.subr.mxu0 0.0
    %107 = vmatpush1.msra.mxu0 0.0
    %108 = vmatprep.subr.mxu0 0.0
    %109 = vmatpush1.msra.mxu0 0.0
    %110 = vmatprep.subr.mxu0 0.0
    %111 = vmatpush1.msra.mxu0 0.0
    %112 = vmatprep.subr.mxu0 0.0
    %113 = vmatpush1.msra.mxu0 0.0
    %114 = vmatprep.subr.mxu0 0.0
    %115 = vmatpush1.msra.mxu0 0.0
    %116 = vmatprep.subr.mxu0 0.0
    %117 = vmatpush1.msra.mxu0 0.0
    %118 = vmatprep.subr.mxu0 0.0
    %119 = vmatpush1.msra.mxu0 0.0
    %120 = vmatprep.subr.mxu0 0.0
    %121 = vmatpush1.msra.mxu0 0.0
    %122 = vmatprep.subr.mxu0 0.0
    %123 = vmatpush1.msra.mxu0 0.0
    %124 = vmatprep.subr.mxu0 0.0
    %125 = vmatpush1.msra.mxu0 0.0
    %126 = vmatprep.mubr.f32.mxu0 0.0
    %127 = vmatmul.mubr.f32.gmra.mrb[0].mxu0 %v60
    %v128 = vpop.f32.mrb[0].mxu0
    %v129 = vadd.f32 0.0, %v128
    %v130 = vpop.f32.mrb[0].mxu0
    %131 = vdwg.mxu0
    %v132 = vrot.slane %v129, 4
    %v133 = vadd.f32 %v129, %v132
    %v134 = vrot.slane %v133, 2
    %v135 = vadd.f32 %v133, %v134
    %v136 = vrot.slane %v135, 1
    %v137 = vadd.f32 %v135, %v136
    %v138 = vrcp.pop 8.0
    %v139 = vmul.f32 %v137, %v138
    %v140 = vmul.f32 %v129, %v129
    %v141 = vrot.slane %v140, 4
    %v142 = vadd.f32 %v140, %v141
    %v143 = vrot.slane %v142, 2
    %v144 = vadd.f32 %v142, %v143
    %v145 = vrot.slane %v144, 1
    %v146 = vadd.f32 %v144, %v145
    %v147 = vmul.f32 %v146, %v138
    %v148 = vmul.f32 %v139, %v139
    %v149 = vsub.f32 %v147, %v148
    %v150 = vmax.f32 %v149, 0.0
    %v151 = vadd.f32 %v150, 1e-05
    %v152 = vrsqrt.pop %v151
    %v153 = vmul.f32 %v53, %v152
    %v154 = vmul.f32 %v139, %v153
    %v156 = vrot.slane %v154, 7
    %v158 = vsub.f32 %v53, %v156
    %v159 = vlaneseq
    %v160 = vshrl.u32 %v159, 7
    %v161 = vsub.s32 0, %v160
    %v162 = vrot.slane %v153, %v161
    %v163 = vmul.f32 %v129, %v162
    %v164 = vlaneseq
    %v165 = vshrl.u32 %v164, 7
    %v166 = vsub.s32 1, %v165
    %v167 = vrot.slane %v158, %v166
    %v168 = vadd.f32 %v163, %v167
    %v169 = vmax.f32 %v168, 0.0
    %v170 = vld [vmem:[#allocation5 + $0x20] sm:$0xff]
    %v171 = vld [vmem:[#allocation5 + $0x28] sm:$0xff]
    %v172 = vld [vmem:[#allocation5 + $0x30] sm:$0xff]
    %v173 = vld [vmem:[#allocation5 + $0x38] sm:$0xff]
    %v174 = vld [vmem:[#allocation5 + $0x40] sm:$0xff]
    %v175 = vld [vmem:[#allocation5 + $0x48] sm:$0xff]
    %v176 = vld [vmem:[#allocation5 + $0x50] sm:$0xff]
    %v177 = vld [vmem:[#allocation5 + $0x58] sm:$0xff]
    %v178 = vld [vmem:[#allocation5 + $0x60] sm:$0xff]
    %v179 = vld [vmem:[#allocation5 + $0x68] sm:$0xff]
    %v180 = vld [vmem:[#allocation5 + $0x70] sm:$0xff]
    %v181 = vld [vmem:[#allocation5 + $0x78] sm:$0xff]
    %v182 = vld [vmem:[#allocation5 + $0x80] sm:$0xff]
    %v183 = vld [vmem:[#allocation5 + $0x88] sm:$0xff]
    %v184 = vld [vmem:[#allocation5 + $0x90] sm:$0xff]
    %v185 = vld [vmem:[#allocation5 + $0x98] sm:$0xff]
    %186 = vmatprep.subr.mxu0 0.0
    %187 = vmatpush1.msra.mxu0 %v170
    %188 = vmatprep.subr.mxu0 0.0
    %189 = vmatpush1.msra.mxu0 %v171
    %190 = vmatprep.subr.mxu0 0.0
    %191 = vmatpush1.msra.mxu0 %v172
    %192 = vmatprep.subr.mxu0 0.0
    %193 = vmatpush1.msra.mxu0 %v173
    %194 = vmatprep.subr.mxu0 0.0
    %195 = vmatpush1.msra.mxu0 %v174
    %196 = vmatprep.subr.mxu0 0.0
    %197 = vmatpush1.msra.mxu0 %v175
    %198 = vmatprep.subr.mxu0 0.0
    %199 = vmatpush1.msra.mxu0 %v176
    %200 = vmatprep.subr.mxu0 0.0
    %201 = vmatpush1.msra.mxu0 %v177
    %202 = vmatprep.subr.mxu0 0.0
    %203 = vmatpush1.msra.mxu0 %v178
    %204 = vmatprep.subr.mxu0 0.0
    %205 = vmatpush1.msra.mxu0 %v179
    %206 = vmatprep.subr.mxu0 0.0
    %207 = vmatpush1.msra.mxu0 %v180
    %208 = vmatprep.subr.mxu0 0.0
    %209 = vmatpush1.msra.mxu0 %v181
    %210 = vmatprep.subr.mxu0 0.0
    %211 = vmatpush1.msra.mxu0 %v182
    %212 = vmatprep.subr.mxu0 0.0
    %213 = vmatpush1.msra.mxu0 %v183
    %214 = vmatprep.subr.mxu0 0.0
    %215 = vmatpush1.msra.mxu0 %v184
    %216 = vmatprep.subr.mxu0 0.0
    %217 = vmatpush1.msra.mxu0 %v185
    %218 = vmatprep.subr.mxu0 0.0
    %219 = vmatpush1.msra.mxu0 0.0
    %220 = vmatprep.subr.mxu0 0.0
    %221 = vmatpush1.msra.mxu0 0.0
    %222 = vmatprep.subr.mxu0 0.0
    %223 = vmatpush1.msra.mxu0 0.0
    %224 = vmatprep.subr.mxu0 0.0
    %225 = vmatpush1.msra.mxu0 0.0
    %226 = vmatprep.subr.mxu0 0.0
    %227 = vmatpush1.msra.mxu0 0.0
    %228 = vmatprep.subr.mxu0 0.0
    %229 = vmatpush1.msra.mxu0 0.0
    %230 = vmatprep.subr.mxu0 0.0
    %231 = vmatpush1.msra.mxu0 0.0
    %232 = vmatprep.subr.mxu0 0.0
    %233 = vmatpush1.msra.mxu0 0.0
    %234 = vmatprep.subr.mxu0 0.0
    %235 = vmatpush1.msra.mxu0 0.0
    %236 = vmatprep.subr.mxu0 0.0
    %237 = vmatpush1.msra.mxu0 0.0
    %238 = vmatprep.subr.mxu0 0.0
    %239 = vmatpush1.msra.mxu0 0.0
    %240 = vmatprep.subr.mxu0 0.0
    %241 = vmatpush1.msra.mxu0 0.0
    %242 = vmatprep.subr.mxu0 0.0
    %243 = vmatpush1.msra.mxu0 0.0
    %244 = vmatprep.subr.mxu0 0.0
    %245 = vmatpush1.msra.mxu0 0.0
    %246 = vmatprep.subr.mxu0 0.0
    %247 = vmatpush1.msra.mxu0 0.0
    %248 = vmatprep.subr.mxu0 0.0
    %249 = vmatpush1.msra.mxu0 0.0
    %250 = vmatprep.mubr.f32.mxu0 0.0
    %251 = vmatmul.mubr.f32.gmra.mrb[0].mxu0 %v169
    %v252 = vpop.f32.mrb[0].mxu0
    %v253 = vadd.f32 0.0, %v252
    %v254 = vpop.f32.mrb[0].mxu0
    %255 = vdwg.mxu0
    %v256 = vrot.slane %v253, 4
    %v257 = vadd.f32 %v253, %v256
    %v258 = vrot.slane %v257, 2
    %v259 = vadd.f32 %v257, %v258
    %v260 = vrot.slane %v259, 1
    %v261 = vadd.f32 %v259, %v260
    %v262 = vmul.f32 %v261, %v138
    %v263 = vmul.f32 %v253, %v253
    %v264 = vrot.slane %v263, 4
    %v265 = vadd.f32 %v263, %v264
    %v266 = vrot.slane %v265, 2
    %v267 = vadd.f32 %v265, %v266
    %v268 = vrot.slane %v267, 1
    %v269 = vadd.f32 %v267, %v268
    %v270 = vmul.f32 %v269, %v138
    %v271 = vmul.f32 %v262, %v262
    %v272 = vsub.f32 %v270, %v271
    %v273 = vmax.f32 %v272, 0.0
    %v274 = vadd.f32 %v273, 1e-05
    %v275 = vrsqrt.pop %v274
    %v276 = vmul.f32 %v53, %v275
    %v277 = vmul.f32 %v262, %v276
    %v279 = vrot.slane %v277, 7
    %v281 = vsub.f32 %v53, %v279
    %v282 = vlaneseq
    %v283 = vshrl.u32 %v282, 7
    %v284 = vsub.s32 2, %v283
    %v285 = vrot.slane %v276, %v284
    %v286 = vmul.f32 %v253, %v285
    %v287 = vlaneseq
    %v288 = vshrl.u32 %v287, 7
    %v289 = vsub.s32 3, %v288
    %v290 = vrot.slane %v281, %v289
    %v291 = vadd.f32 %v286, %v290
    %v292 = vmax.f32 %v291, 0.0
    %v293 = vld [vmem:[#allocation5 + $0xa0] sm:$0xff]
    %v294 = vld [vmem:[#allocation5 + $0xa8] sm:$0xff]
    %v295 = vld [vmem:[#allocation5 + $0xb0] sm:$0xff]
    %v296 = vld [vmem:[#allocation5 + $0xb8] sm:$0xff]
    %v297 = vld [vmem:[#allocation5 + $0xc0] sm:$0xff]
    %v298 = vld [vmem:[#allocation5 + $0xc8] sm:$0xff]
    %v299 = vld [vmem:[#allocation5 + $0xd0] sm:$0xff]
    %v300 = vld [vmem:[#allocation5 + $0xd8] sm:$0xff]
    %v301 = vld [vmem:[#allocation5 + $0xe0] sm:$0xff]
    %v302 = vld [vmem:[#allocation5 + $0xe8] sm:$0xff]
    %v303 = vld [vmem:[#allocation5 + $0xf0] sm:$0xff]
    %v304 = vld [vmem:[#allocation5 + $0xf8] sm:$0xff]
    %v305 = vld [vmem:[#allocation5 + $0x100] sm:$0xff]
    %v306 = vld [vmem:[#allocation5 + $0x108] sm:$0xff]
    %v307 = vld [vmem:[#allocation5 + $0x110] sm:$0xff]
    %v308 = vld [vmem:[#allocation5 + $0x118] sm:$0xff]
    %309 = vmatprep.subr.mxu0 0.0
    %310 = vmatpush1.msra.mxu0 %v293
    %311 = vmatprep.subr.mxu0 0.0
    %312 = vmatpush1.msra.mxu0 %v294
    %313 = vmatprep.subr.mxu0 0.0
    %314 = vmatpush1.msra.mxu0 %v295
    %315 = vmatprep.subr.mxu0 0.0
    %316 = vmatpush1.msra.mxu0 %v296
    %317 = vmatprep.subr.mxu0 0.0
    %318 = vmatpush1.msra.mxu0 %v297
    %319 = vmatprep.subr.mxu0 0.0
    %320 = vmatpush1.msra.mxu0 %v298
    %321 = vmatprep.subr.mxu0 0.0
    %322 = vmatpush1.msra.mxu0 %v299
    %323 = vmatprep.subr.mxu0 0.0
    %324 = vmatpush1.msra.mxu0 %v300
    %325 = vmatprep.subr.mxu0 0.0
    %326 = vmatpush1.msra.mxu0 %v301
    %327 = vmatprep.subr.mxu0 0.0
    %328 = vmatpush1.msra.mxu0 %v302
    %329 = vmatprep.subr.mxu0 0.0
    %330 = vmatpush1.msra.mxu0 %v303
    %331 = vmatprep.subr.mxu0 0.0
    %332 = vmatpush1.msra.mxu0 %v304
    %333 = vmatprep.subr.mxu0 0.0
    %334 = vmatpush1.msra.mxu0 %v305
    %335 = vmatprep.subr.mxu0 0.0
    %336 = vmatpush1.msra.mxu0 %v306
    %337 = vmatprep.subr.mxu0 0.0
    %338 = vmatpush1.msra.mxu0 %v307
    %339 = vmatprep.subr.mxu0 0.0
    %340 = vmatpush1.msra.mxu0 %v308
    %341 = vmatprep.subr.mxu0 0.0
    %342 = vmatpush1.msra.mxu0 0.0
    %343 = vmatprep.subr.mxu0 0.0
    %344 = vmatpush1.msra.mxu0 0.0
    %345 = vmatprep.subr.mxu0 0.0
    %346 = vmatpush1.msra.mxu0 0.0
    %347 = vmatprep.subr.mxu0 0.0
    %348 = vmatpush1.msra.mxu0 0.0
    %349 = vmatprep.subr.mxu0 0.0
    %350 = vmatpush1.msra.mxu0 0.0
    %351 = vmatprep.subr.mxu0 0.0
    %352 = vmatpush1.msra.mxu0 0.0
    %353 = vmatprep.subr.mxu0 0.0
    %354 = vmatpush1.msra.mxu0 0.0
    %355 = vmatprep.subr.mxu0 0.0
    %356 = vmatpush1.msra.mxu0 0.0
    %357 = vmatprep.subr.mxu0 0.0
    %358 = vmatpush1.msra.mxu0 0.0
    %359 = vmatprep.subr.mxu0 0.0
    %360 = vmatpush1.msra.mxu0 0.0
    %361 = vmatprep.subr.mxu0 0.0
    %362 = vmatpush1.msra.mxu0 0.0
    %363 = vmatprep.subr.mxu0 0.0
    %364 = vmatpush1.msra.mxu0 0.0
    %365 = vmatprep.subr.mxu0 0.0
    %366 = vmatpush1.msra.mxu0 0.0
    %367 = vmatprep.subr.mxu0 0.0
    %368 = vmatpush1.msra.mxu0 0.0
    %369 = vmatprep.subr.mxu0 0.0
    %370 = vmatpush1.msra.mxu0 0.0
    %371 = vmatprep.subr.mxu0 0.0
    %372 = vmatpush1.msra.mxu0 0.0
    %373 = vmatprep.mubr.f32.mxu0 0.0
    %374 = vmatmul.mubr.f32.gmra.mrb[0].mxu0 %v292
    %v375 = vpop.f32.mrb[0].mxu0
    %v376 = vadd.f32 0.0, %v375
    %v377 = vpop.f32.mrb[0].mxu0
    %378 = vdwg.mxu0
    %v379 = vrot.slane %v376, 4
    %v380 = vadd.f32 %v376, %v379
    %v381 = vrot.slane %v380, 2
    %v382 = vadd.f32 %v380, %v381
    %v383 = vrot.slane %v382, 1
    %v384 = vadd.f32 %v382, %v383
    %v385 = vmul.f32 %v384, %v138
    %v386 = vmul.f32 %v376, %v376
    %v387 = vrot.slane %v386, 4
    %v388 = vadd.f32 %v386, %v387
    %v389 = vrot.slane %v388, 2
    %v390 = vadd.f32 %v388, %v389
    %v391 = vrot.slane %v390, 1
    %v392 = vadd.f32 %v390, %v391
    %v393 = vmul.f32 %v392, %v138
    %v394 = vmul.f32 %v385, %v385
    %v395 = vsub.f32 %v393, %v394
    %v396 = vmax.f32 %v395, 0.0
    %v397 = vadd.f32 %v396, 1e-05
    %v398 = vrsqrt.pop %v397
    %v399 = vmul.f32 %v53, %v398
    %v400 = vmul.f32 %v385, %v399
    %v402 = vrot.slane %v400, 7
    %v404 = vsub.f32 %v53, %v402
    %v405 = vlaneseq
    %v406 = vshrl.u32 %v405, 7
    %v407 = vsub.s32 4, %v406
    %v408 = vrot.slane %v399, %v407
    %v409 = vmul.f32 %v376, %v408
    %v410 = vlaneseq
    %v411 = vshrl.u32 %v410, 7
    %v412 = vsub.s32 5, %v411
    %v413 = vrot.slane %v404, %v412
    %v414 = vadd.f32 %v409, %v413
    %v415 = vmax.f32 %v414, 0.0
    %v416 = vld [vmem:[#allocation5 + $0x120] sm:$0xff]
    %v417 = vld [vmem:[#allocation5 + $0x128] sm:$0xff]
    %v418 = vld [vmem:[#allocation5 + $0x130] sm:$0xff]
    %v419 = vld [vmem:[#allocation5 + $0x138] sm:$0xff]
    %v420 = vld [vmem:[#allocation5 + $0x140] sm:$0xff]
    %v421 = vld [vmem:[#allocation5 + $0x148] sm:$0xff]
    %v422 = vld [vmem:[#allocation5 + $0x150] sm:$0xff]
    %v423 = vld [vmem:[#allocation5 + $0x158] sm:$0xff]
    %v424 = vld [vmem:[#allocation5 + $0x160] sm:$0xff]
    %v425 = vld [vmem:[#allocation5 + $0x168] sm:$0xff]
    %v426 = vld [vmem:[#allocation5 + $0x170] sm:$0xff]
    %v427 = vld [vmem:[#allocation5 + $0x178] sm:$0xff]
    %v428 = vld [vmem:[#allocation5 + $0x180] sm:$0xff]
    %v429 = vld [vmem:[#allocation5 + $0x188] sm:$0xff]
    %v430 = vld [vmem:[#allocation5 + $0x190] sm:$0xff]
    %v431 = vld [vmem:[#allocation5 + $0x198] sm:$0xff]
    %v432 = vlaneseq
    %v433 = vshrl.u32 %v432, 7
    %v434 = vsub.s32 6, %v433
    %v435 = vrot.slane %v53, %v434
    %436 = vmatprep.subr.mxu0 0.0
    %437 = vmatpush1.msra.mxu0 %v416
    %438 = vmatprep.subr.mxu0 0.0
    %439 = vmatpush1.msra.mxu0 %v417
    %440 = vmatprep.subr.mxu0 0.0
    %441 = vmatpush1.msra.mxu0 %v418
    %442 = vmatprep.subr.mxu0 0.0
    %443 = vmatpush1.msra.mxu0 %v419
    %444 = vmatprep.subr.mxu0 0.0
    %445 = vmatpush1.msra.mxu0 %v420
    %446 = vmatprep.subr.mxu0 0.0
    %447 = vmatpush1.msra.mxu0 %v421
    %448 = vmatprep.subr.mxu0 0.0
    %449 = vmatpush1.msra.mxu0 %v422
    %450 = vmatprep.subr.mxu0 0.0
    %451 = vmatpush1.msra.mxu0 %v423
    %452 = vmatprep.subr.mxu0 0.0
    %453 = vmatpush1.msra.mxu0 %v424
    %454 = vmatprep.subr.mxu0 0.0
    %455 = vmatpush1.msra.mxu0 %v425
    %456 = vmatprep.subr.mxu0 0.0
    %457 = vmatpush1.msra.mxu0 %v426
    %458 = vmatprep.subr.mxu0 0.0
    %459 = vmatpush1.msra.mxu0 %v427
    %460 = vmatprep.subr.mxu0 0.0
    %461 = vmatpush1.msra.mxu0 %v428
    %462 = vmatprep.subr.mxu0 0.0
    %463 = vmatpush1.msra.mxu0 %v429
    %464 = vmatprep.subr.mxu0 0.0
    %465 = vmatpush1.msra.mxu0 %v430
    %466 = vmatprep.subr.mxu0 0.0
    %467 = vmatpush1.msra.mxu0 %v431
    %468 = vmatprep.subr.mxu0 0.0
    %469 = vmatpush1.msra.mxu0 0.0
    %470 = vmatprep.subr.mxu0 0.0
    %471 = vmatpush1.msra.mxu0 0.0
    %472 = vmatprep.subr.mxu0 0.0
    %473 = vmatpush1.msra.mxu0 0.0
    %474 = vmatprep.subr.mxu0 0.0
    %475 = vmatpush1.msra.mxu0 0.0
    %476 = vmatprep.subr.mxu0 0.0
    %477 = vmatpush1.msra.mxu0 0.0
    %478 = vmatprep.subr.mxu0 0.0
    %479 = vmatpush1.msra.mxu0 0.0
    %480 = vmatprep.subr.mxu0 0.0
    %481 = vmatpush1.msra.mxu0 0.0
    %482 = vmatprep.subr.mxu0 0.0
    %483 = vmatpush1.msra.mxu0 0.0
    %484 = vmatprep.subr.mxu0 0.0
    %485 = vmatpush1.msra.mxu0 0.0
    %486 = vmatprep.subr.mxu0 0.0
    %487 = vmatpush1.msra.mxu0 0.0
    %488 = vmatprep.subr.mxu0 0.0
    %489 = vmatpush1.msra.mxu0 0.0
    %490 = vmatprep.subr.mxu0 0.0
    %491 = vmatpush1.msra.mxu0 0.0
    %492 = vmatprep.subr.mxu0 0.0
    %493 = vmatpush1.msra.mxu0 0.0
    %494 = vmatprep.subr.mxu0 0.0
    %495 = vmatpush1.msra.mxu0 0.0
    %496 = vmatprep.subr.mxu0 0.0
    %497 = vmatpush1.msra.mxu0 0.0
    %498 = vmatprep.subr.mxu0 0.0
    %499 = vmatpush1.msra.mxu0 0.0
    %500 = vmatprep.mubr.f32.mxu0 0.0
    %501 = vmatmul.mubr.f32.gmra.mrb[0].mxu0 %v415
    %v502 = vpop.f32.mrb[0].mxu0
    %v503 = vadd.f32 %v435, %v502
    %v504 = vpop.f32.mrb[0].mxu0
    %505 = vdwg.mxu0
    %506 = vst [vmem:[#allocation8] sm:$0xff] %v503
    // Predicated region
    $region26: #{forward.1} parent=1 // pred_check
      _
    $region27: #{forward.1} parent=1 // pred_check_branch
      %508 = sbr.rel (0) target = $region29
    $region28: #{forward.1} parent=1 // pred_region
      %s510 = ssub.s32 128, 128
      %511 = vsyncadd [#allocation4], %s510
      %s513 = sshll.u32 [#allocation8], 4
      %s514 = int_to_ptr.vmem [resolvable:$true] %s513
      %516 = dma.vmem_to_hbm [thread:$0]  %s514, 128, %s3, [#allocation4]
    $region29: #{forward.1} parent=1 // pred_fallthru
      _
    // Predicated region
    $region30: #{forward.1} parent=1 // pred_check
      _
    $region31: #{forward.1} parent=1 // pred_check_branch
      %518 = sbr.rel (0) target = $region33
    $region32: #{forward.1} parent=1 // pred_region
      %519 = dma.done [#allocation4], 128
    $region33: #{forward.1} parent=1 // pred_fallthru
      _
    %520 = vsyncpa [#allocation3], 1
    %521 = vsyncpa [#allocation6], 1
    %522 = vsyncpa [#allocation4], 1

</llo_original>
